<compile_context>
chip_gen: v5e
topology: v5e:2x2
jax: 0.10.0
libtpu: 0.0.40
codegen_flags: <defaults>
</compile_context>

<pallas_src>
import functools

import jax
import jax.numpy as jnp
import numpy as np
from jax import lax
from jax.experimental import pallas as pl
from jax.experimental.pallas import tpu as pltpu


# ----------------------------------------------------------------------------
# Fused Pallas kernel (one batch-chunk per grid step, channel-major layout)
# ----------------------------------------------------------------------------
def _fused_kernel(x_ref, cand_ref, mask_ref, w1_ref, b1_ref, w2_ref, b2_ref,
                  w3_ref, b3_ref, out_ref, idx_ref, *, cin, cmid, cout, out_w):
    """Fused DownsamplingBottleneck for one batch chunk.

    Lane axis packs Nb samples: column = nb*Ho*Wo + r*Wo + c   (L lanes).

    x_ref   : (4*cin, L) f32   space-to-depth input, row k = (dy*2+dx)*cin + c
    cand_ref: (4, L) int32     flat H*W argmax candidates for the 4 pool taps
    mask_ref: (9, L) f32       0/1 validity per 3x3 tap (image-border aware)
    w1_ref  : (cmid, 4*cin)    BN1-folded 2x2/s2 conv weights        [VMEM]
    b1_ref  : (cmid, 1)        BN1 shifts                            [VMEM]
    w2_ref  : (cmid*9*cmid,)   BN2-folded 3x3 weights, idx=(co*9+t)*cmid+ci [SMEM]
    b2_ref  : (cmid,)          BN2 shifts                            [SMEM]
    w3_ref  : (cout, cmid)     BN3-folded 1x1 conv weights           [VMEM]
    b3_ref  : (cout, 1)        BN3 shifts                            [VMEM]
    out_ref : (cout, L) f32    idx_ref: (cin, L) int32
    """
    x = x_ref[...]                                      # (4*cin, L)

    # ---- main branch: 2x2 / stride-2 max pool + flat (H*W) argmax indices ----
    v00 = x[0 * cin:1 * cin, :]
    v01 = x[1 * cin:2 * cin, :]
    v10 = x[2 * cin:3 * cin, :]
    v11 = x[3 * cin:4 * cin, :]
    mx = jnp.maximum(jnp.maximum(v00, v01), jnp.maximum(v10, v11))
    cand = cand_ref[...]                                # (4, L) precomputed
    # Row-major first-max tie-break (PyTorch window scan order).
    idx_ref[...] = jnp.where(v00 == mx, cand[0:1, :],
                   jnp.where(v01 == mx, cand[1:2, :],
                   jnp.where(v10 == mx, cand[2:3, :], cand[3:4, :])))

    # ---- ext_conv1: 2x2/s2 conv as one (cmid,4cin)@(4cin,L) MXU matmul -------
    ext1 = jnp.maximum(
        jnp.dot(w1_ref[...], x, preferred_element_type=jnp.float32) + b1_ref[...],
        0.0)                                            # (cmid, L)

    # ---- ext_conv2: 3x3 pad=1 conv, im2col via static lane shifts ------------
    # Tap (dy,dx) reads ext1 shifted by off=(dy-1)*Wo+(dx-1) lanes.  The
    # precomputed border masks zero exactly the positions whose source pixel is
    # outside the image -- which are also exactly the positions where the shift
    # would leak across a packed-sample / block wrap-around boundary, so the
    # batch-into-lanes packing stays correct.  Weights are SMEM scalar splats;
    # 3 partial accumulators per output channel (one per dy) keep the VPU
    # dependency chain short.
    parts = [[None, None, None] for _ in range(cmid)]
    for dy in range(3):
        for dx in range(3):
            t = dy * 3 + dx
            off = (dy - 1) * out_w + (dx - 1)
            tap = ext1 if off == 0 else jnp.roll(ext1, -off, axis=1)
            if t != 4:                                   # centre tap never masked
                tap = tap * mask_ref[t:t + 1, :]
            for ci in range(cmid):
                tap_ci = tap[ci:ci + 1, :]
                for co in range(cmid):
                    term = w2_ref[(co * 9 + t) * cmid + ci] * tap_ci
                    acc = parts[co][dy]
                    parts[co][dy] = term if acc is None else acc + term
    ext2_rows = [
        jnp.maximum(b2_ref[co] + parts[co][0] + parts[co][1] + parts[co][2], 0.0)
        for co in range(cmid)]                           # cmid rows of (1, L)

    # ---- ext_conv3: 1x1 conv + BN + ReLU (Dropout2d(p=0) is the identity) ----
    acc3 = b3_ref[...]                                   # (cout, 1) -> broadcasts
    for ci in range(cmid):
        acc3 = acc3 + w3_ref[:, ci:ci + 1] * ext2_rows[ci]
    ext3 = jnp.maximum(acc3, 0.0)                        # (cout, L)

    # ---- merge: main branch zero-padded to cout channels, add, final ReLU ----
    out_ref[0:cin, :] = jnp.maximum(mx + ext3[0:cin, :], 0.0)
    if cout > cin:
        out_ref[cin:cout, :] = ext3[cin:cout, :]         # relu(0 + relu(x)) == relu(x)


# ----------------------------------------------------------------------------
# Wrapper: NCHW in / NCHW out, BN folded, batch packed into the lane axis
# ----------------------------------------------------------------------------
def _pick_batch_pack(n, hw, lane_target=128, max_lanes=16384):
    """Pick Nb (a divisor of n) so the packed lane width Nb*hw is >= 128,
    preferring a multiple of 128, while keeping per-step blocks small enough
    for v7x's 64 MiB VMEM.  Smallest such divisor -> most grid steps for the
    two v7x TensorCores."""
    divisors = [d for d in range(1, n + 1) if n % d == 0]
    for d in divisors:
        if (d * hw) % lane_target == 0 and d * hw <= max_lanes:
            return d
    for d in divisors:
        if d * hw >= lane_target:
            return d
    return n


def downsampling_bottleneck(x_nchw, p):
    N, Cin, H, W = x_nchw.shape
    assert H % 2 == 0 and W % 2 == 0
    Ho, Wo = H // 2, W // 2
    HW = Ho * Wo
    Cmid = p["w1"].shape[3]
    Cout = p["w3"].shape[1]

    Nb = _pick_batch_pack(N, HW)
    G = N // Nb
    L = Nb * HW
    # TODO(synk): for very large images (per-sample bytes approaching v7x's
    # 64 MiB VMEM) add a grid axis over output rows with a 1-row halo instead
    # of loading the whole sample per step.

    # One space-to-depth transpose exposing the 2x2/stride-2 windows; feeds BOTH
    # the maxpool and ext_conv1.  allow_input_fusion lets XLA fuse it into the
    # Pallas input DMA rather than materializing it in HBM.
    x_s2d = (x_nchw.reshape(G, Nb, Cin, Ho, 2, Wo, 2)
             .transpose(0, 4, 6, 2, 1, 3, 5)
             .reshape(G, 4 * Cin, L))

    # ---- hoisted index / mask constants (constant index_map, VMEM-resident) --
    m = np.arange(HW, dtype=np.int32)
    r = m // Wo
    c = m - r * Wo
    i00 = (2 * r) * W + 2 * c
    cand = np.stack([i00, i00 + 1, i00 + W, i00 + W + 1]).astype(np.int32)
    cand = np.tile(cand, (1, Nb))                                   # (4, L)

    masks = []
    for dy in range(3):
        for dx in range(3):
            v = np.ones(HW, dtype=bool)
            if dy == 0:
                v &= (r >= 1)
            if dy == 2:
                v &= (r <= Ho - 2)
            if dx == 0:
                v &= (c >= 1)
            if dx == 2:
                v &= (c <= Wo - 2)
            masks.append(v)
    mask9 = np.tile(np.stack(masks).astype(np.float32), (1, Nb))    # (9, L)

    # ---- fold inference-mode BN scale into conv weights ----------------------
    w1t = p["w1"].reshape(4 * Cin, Cmid).T * p["bn1_scale"][:, None]   # (Cmid, 4Cin)
    w2t = p["w2"].reshape(9 * Cmid, Cmid).T * p["bn2_scale"][:, None]  # (Cmid, 9Cmid)
    w3t = p["w3"].T * p["bn3_scale"][:, None]                          # (Cout, Cmid)
    b1 = p["bn1_shift"][:, None]
    b3 = p["bn3_shift"][:, None]
    w2_flat = w2t.reshape(-1)                 # SMEM scalar-splat FMA operands
    b2_flat = p["bn2_shift"]                  # SMEM (Cmid,)

    kernel = functools.partial(_fused_kernel, cin=Cin, cmid=Cmid, cout=Cout,
                               out_w=Wo)

    out_flat, idx_flat = pl.pallas_call(
        kernel,
        grid=(G,),
        in_specs=[
            pl.BlockSpec((None, 4 * Cin, L), lambda g: (g, 0, 0)),     # x (s2d)
            pl.BlockSpec((4, L), lambda g: (0, 0)),                    # pool idx cands
            pl.BlockSpec((9, L), lambda g: (0, 0)),                    # 3x3 tap masks
            pl.BlockSpec((Cmid, 4 * Cin), lambda g: (0, 0)),           # w1
            pl.BlockSpec((Cmid, 1), lambda g: (0, 0)),                 # b1
            pl.BlockSpec(memory_space=pltpu.MemorySpace.SMEM),         # w2 (flat)
            pl.BlockSpec(memory_space=pltpu.MemorySpace.SMEM),         # b2 (flat)
            pl.BlockSpec((Cout, Cmid), lambda g: (0, 0)),              # w3
            pl.BlockSpec((Cout, 1), lambda g: (0, 0)),                 # b3
        ],
        out_specs=(
            pl.BlockSpec((None, Cout, L), lambda g: (g, 0, 0)),
            pl.BlockSpec((None, Cin, L), lambda g: (g, 0, 0)),
        ),
        out_shape=(
            jax.ShapeDtypeStruct((G, Cout, L), jnp.float32),
            jax.ShapeDtypeStruct((G, Cin, L), jnp.int32),
        ),
        compiler_params=pltpu.CompilerParams(
            dimension_semantics=("parallel",),
            vmem_limit_bytes=32 * 1024 * 1024,
            allow_input_fusion=[True] + [False] * 8,
        ),
    )(x_s2d, cand, mask9, w1t, b1, w2_flat, b2_flat, w3t, b3)

    # Unpack packed lanes back to NCHW (no-op permutation when Nb == 1).
    out = (out_flat.reshape(G, Cout, Nb, Ho, Wo)
           .transpose(0, 2, 1, 3, 4).reshape(N, Cout, Ho, Wo))
    idx = (idx_flat.reshape(G, Cin, Nb, Ho, Wo)
           .transpose(0, 2, 1, 3, 4).reshape(N, Cin, Ho, Wo))
    return out, idx


# ----------------------------------------------------------------------------
# Deterministic parameter init (synthetic; BN folded to scale/shift, eps=1e-5)
# ----------------------------------------------------------------------------
def init_params(key, in_channels, out_channels, internal_ratio=4):
    cmid = in_channels // internal_ratio
    ks = jax.random.split(key, 15)
    eps = 1e-5

    def bn(kg, kb, km, kv, c):
        gamma = jax.random.uniform(kg, (c,), minval=0.5, maxval=1.5)
        beta = 0.1 * jax.random.normal(kb, (c,))
        mean = 0.1 * jax.random.normal(km, (c,))
        var = jax.random.uniform(kv, (c,), minval=0.5, maxval=1.5)
        scale = gamma / jnp.sqrt(var + eps)
        shift = beta - mean * scale
        return scale.astype(jnp.float32), shift.astype(jnp.float32)

    bn1s, bn1b = bn(ks[3], ks[4], ks[5], ks[6], cmid)
    bn2s, bn2b = bn(ks[7], ks[8], ks[9], ks[10], cmid)
    bn3s, bn3b = bn(ks[11], ks[12], ks[13], ks[14], out_channels)
    return {
        "w1": 0.1 * jax.random.normal(ks[0], (2, 2, in_channels, cmid), jnp.float32),
        "w2": 0.1 * jax.random.normal(ks[1], (3, 3, cmid, cmid), jnp.float32),
        "w3": 0.1 * jax.random.normal(ks[2], (cmid, out_channels), jnp.float32),
        "bn1_scale": bn1s, "bn1_shift": bn1b,
        "bn2_scale": bn2s, "bn2_shift": bn2b,
        "bn3_scale": bn3s, "bn3_shift": bn3b,
    }


# ----------------------------------------------------------------------------
# Pure-JAX reference (for the sanity check)
# ----------------------------------------------------------------------------
def reference(x_nchw, p):
    x = jnp.transpose(x_nchw, (0, 2, 3, 1))
    dn = ("NHWC", "HWIO", "NHWC")

    def bn_relu(y, s, b):
        return jnp.maximum(y * s + b, 0.0)

    ext = lax.conv_general_dilated(x, p["w1"], (2, 2), "VALID", dimension_numbers=dn)
    ext = bn_relu(ext, p["bn1_scale"], p["bn1_shift"])
    ext = lax.conv_general_dilated(ext, p["w2"], (1, 1), ((1, 1), (1, 1)),
                                   dimension_numbers=dn)
    ext = bn_relu(ext, p["bn2_scale"], p["bn2_shift"])
    ext = lax.conv_general_dilated(ext, p["w3"][None, None], (1, 1), "VALID",
                                   dimension_numbers=dn)
    ext = bn_relu(ext, p["bn3_scale"], p["bn3_shift"])

    v00 = x[:, 0::2, 0::2, :]
    v01 = x[:, 0::2, 1::2, :]
    v10 = x[:, 1::2, 0::2, :]
    v11 = x[:, 1::2, 1::2, :]
    main = jnp.maximum(jnp.maximum(v00, v01), jnp.maximum(v10, v11))
    cout, cin = ext.shape[-1], x.shape[-1]
    main = jnp.concatenate(
        [main, jnp.zeros(main.shape[:-1] + (cout - cin,), jnp.float32)], axis=-1)
    return jnp.maximum(main + ext, 0.0).transpose(0, 3, 1, 2)


# ----------------------------------------------------------------------------
if __name__ == "__main__":
    key = jax.random.PRNGKey(0)
    kx, kp = jax.random.split(key)

    N, Cin, H, W = 2, 8, 16, 16
    Cout = 16
    x = jax.random.normal(kx, (N, Cin, H, W), dtype=jnp.float32)
    params = init_params(kp, Cin, Cout, internal_ratio=4)

    out, idx = jax.jit(downsampling_bottleneck)(x, params)
    out = jax.block_until_ready(out)
    idx = jax.block_until_ready(idx)

    Ho, Wo = H // 2, W // 2
    assert out.shape == (N, Cout, Ho, Wo)
    assert idx.shape == (N, Cin, Ho, Wo)
    assert idx.dtype == jnp.int32

    # Output check vs. pure-JAX (lax conv) reference.
    ref = reference(x, params)
    np.testing.assert_allclose(np.asarray(out), np.asarray(ref), atol=1e-2, rtol=1e-2)

    # Pool-index check: gathering x at the returned flat indices must reproduce
    # the 2x2/stride-2 max values exactly.
    pooled_ref = x.reshape(N, Cin, Ho, 2, Wo, 2).max(axis=(3, 5))
    gathered = jnp.take_along_axis(
        x.reshape(N, Cin, H * W), idx.reshape(N, Cin, Ho * Wo), axis=2
    ).reshape(N, Cin, Ho, Wo)
    np.testing.assert_array_equal(np.asarray(gathered), np.asarray(pooled_ref))

    print("KERNEL_OK")
</pallas_src>

<mosaic_0001>
module attributes {stable_mosaic.version = 11 : i64} {
  func.func @_fused_kernel(%arg0: i32, %arg1: memref<1x32x128xf32, #tpu.memory_space<vmem>>, %arg2: memref<4x128xi32, #tpu.memory_space<vmem>>, %arg3: memref<9x128xf32, #tpu.memory_space<vmem>>, %arg4: memref<2x32xf32, #tpu.memory_space<vmem>>, %arg5: memref<2x1xf32, #tpu.memory_space<vmem>>, %arg6: memref<36xf32, #tpu.memory_space<smem>>, %arg7: memref<2xf32, #tpu.memory_space<smem>>, %arg8: memref<16x2xf32, #tpu.memory_space<vmem>>, %arg9: memref<16x1xf32, #tpu.memory_space<vmem>>, %arg10: memref<1x16x128xf32, #tpu.memory_space<vmem>>, %arg11: memref<1x8x128xi32, #tpu.memory_space<vmem>>) attributes {dimension_semantics = [#tpu.dimension_semantics<parallel>], iteration_bounds = array<i64: 1>, scalar_prefetch = 0 : i64, scratch_operands = 0 : i64, tpu.core_type = #tpu.core_type<tc>, window_params = [{transform_indices = @transform_0, window_bounds = array<i64: 1, 32, 128>}, {pipeline_mode = #tpu.pipeline_mode<synchronous>, transform_indices = @transform_1, window_bounds = array<i64: 4, 128>}, {pipeline_mode = #tpu.pipeline_mode<synchronous>, transform_indices = @transform_2, window_bounds = array<i64: 9, 128>}, {pipeline_mode = #tpu.pipeline_mode<synchronous>, transform_indices = @transform_3, window_bounds = array<i64: 2, 32>}, {pipeline_mode = #tpu.pipeline_mode<synchronous>, transform_indices = @transform_4, window_bounds = array<i64: 2, 1>}, {transform_indices = @transform_5, window_bounds = array<i64: 36>}, {transform_indices = @transform_6, window_bounds = array<i64: 2>}, {pipeline_mode = #tpu.pipeline_mode<synchronous>, transform_indices = @transform_7, window_bounds = array<i64: 16, 2>}, {pipeline_mode = #tpu.pipeline_mode<synchronous>, transform_indices = @transform_8, window_bounds = array<i64: 16, 1>}, {transform_indices = @transform_9, window_bounds = array<i64: 1, 16, 128>}, {transform_indices = @transform_10, window_bounds = array<i64: 1, 8, 128>}]} {
    %c0 = arith.constant 0 : index
    %c0_0 = arith.constant 0 : index
    %c0_1 = arith.constant 0 : index
    %0 = vector.load %arg1[%c0, %c0_0, %c0_1] : memref<1x32x128xf32, #tpu.memory_space<vmem>>, vector<1x32x128xf32>
    %1 = vector.shape_cast %0 : vector<1x32x128xf32> to vector<32x128xf32>
    %2 = vector.extract_strided_slice %1 {offsets = [0, 0], sizes = [8, 128], strides = [1, 1]} : vector<32x128xf32> to vector<8x128xf32>
    %3 = vector.extract_strided_slice %1 {offsets = [8, 0], sizes = [8, 128], strides = [1, 1]} : vector<32x128xf32> to vector<8x128xf32>
    %4 = vector.extract_strided_slice %1 {offsets = [16, 0], sizes = [8, 128], strides = [1, 1]} : vector<32x128xf32> to vector<8x128xf32>
    %5 = vector.extract_strided_slice %1 {offsets = [24, 0], sizes = [8, 128], strides = [1, 1]} : vector<32x128xf32> to vector<8x128xf32>
    %6 = arith.maximumf %2, %3 : vector<8x128xf32>
    %7 = arith.maximumf %4, %5 : vector<8x128xf32>
    %8 = arith.maximumf %6, %7 : vector<8x128xf32>
    %c0_2 = arith.constant 0 : index
    %c0_3 = arith.constant 0 : index
    %9 = vector.load %arg2[%c0_2, %c0_3] : memref<4x128xi32, #tpu.memory_space<vmem>>, vector<4x128xi32>
    %10 = arith.cmpf oeq, %2, %8 : vector<8x128xf32>
    %11 = vector.extract_strided_slice %9 {offsets = [0, 0], sizes = [1, 128], strides = [1, 1]} : vector<4x128xi32> to vector<1x128xi32>
    %12 = arith.cmpf oeq, %3, %8 : vector<8x128xf32>
    %13 = vector.extract_strided_slice %9 {offsets = [1, 0], sizes = [1, 128], strides = [1, 1]} : vector<4x128xi32> to vector<1x128xi32>
    %14 = arith.cmpf oeq, %4, %8 : vector<8x128xf32>
    %15 = vector.extract_strided_slice %9 {offsets = [2, 0], sizes = [1, 128], strides = [1, 1]} : vector<4x128xi32> to vector<1x128xi32>
    %16 = vector.extract_strided_slice %9 {offsets = [3, 0], sizes = [1, 128], strides = [1, 1]} : vector<4x128xi32> to vector<1x128xi32>
    %17 = vector.shape_cast %15 : vector<1x128xi32> to vector<1x128xi32>
    %18 = vector.broadcast %17 : vector<1x128xi32> to vector<8x128xi32>
    %19 = vector.shape_cast %16 : vector<1x128xi32> to vector<1x128xi32>
    %20 = vector.broadcast %19 : vector<1x128xi32> to vector<8x128xi32>
    %21 = arith.select %14, %18, %20 : vector<8x128xi1>, vector<8x128xi32>
    %22 = vector.shape_cast %13 : vector<1x128xi32> to vector<1x128xi32>
    %23 = vector.broadcast %22 : vector<1x128xi32> to vector<8x128xi32>
    %24 = arith.select %12, %23, %21 : vector<8x128xi1>, vector<8x128xi32>
    %25 = vector.shape_cast %11 : vector<1x128xi32> to vector<1x128xi32>
    %26 = vector.broadcast %25 : vector<1x128xi32> to vector<8x128xi32>
    %27 = arith.select %10, %26, %24 : vector<8x128xi1>, vector<8x128xi32>
    %c0_4 = arith.constant 0 : index
    %c0_5 = arith.constant 0 : index
    %c0_6 = arith.constant 0 : index
    %28 = vector.load %arg11[%c0_4, %c0_5, %c0_6] : memref<1x8x128xi32, #tpu.memory_space<vmem>>, vector<1x8x128xi32>
    %29 = vector.shape_cast %28 : vector<1x8x128xi32> to vector<8x128xi32>
    %30 = vector.shape_cast %27 : vector<8x128xi32> to vector<1x8x128xi32>
    tpu.vector_store %arg11[%c0_4, %c0_5, %c0_6], %30 {strides = array<i32>} : memref<1x8x128xi32, #tpu.memory_space<vmem>>, vector<1x8x128xi32>,
    %c0_7 = arith.constant 0 : index
    %c0_8 = arith.constant 0 : index
    %31 = vector.load %arg4[%c0_7, %c0_8] : memref<2x32xf32, #tpu.memory_space<vmem>>, vector<2x32xf32>
    %cst = arith.constant dense<0.000000e+00> : vector<2x128xf32>
    %32 = tpu.matmul %31, %1, %cst {dimension_numbers = #tpu.dot_dimension_numbers<[1], [0], [0], [1], [0, 0, 1, 1], [], []>} : vector<2x32xf32>, vector<32x128xf32>, vector<2x128xf32> -> vector<2x128xf32>
    %c0_9 = arith.constant 0 : index
    %c0_10 = arith.constant 0 : index
    %33 = vector.load %arg5[%c0_9, %c0_10] : memref<2x1xf32, #tpu.memory_space<vmem>>, vector<2x1xf32>
    %34 = vector.broadcast %33 : vector<2x1xf32> to vector<2x128xf32>
    %35 = arith.addf %32, %34 : vector<2x128xf32>
    %cst_11 = arith.constant 0.000000e+00 : f32
    %36 = vector.broadcast %cst_11 : f32 to vector<2x128xf32>
    %37 = arith.maximumf %35, %36 : vector<2x128xf32>
    %38 = vector.extract_strided_slice %37 {offsets = [0, 119], sizes = [2, 9], strides = [1, 1]} : vector<2x128xf32> to vector<2x9xf32>
    %39 = vector.extract_strided_slice %37 {offsets = [0, 0], sizes = [2, 119], strides = [1, 1]} : vector<2x128xf32> to vector<2x119xf32>
    %40 = tpu.concatenate %38, %39 in 1 : vector<2x9xf32>, vector<2x119xf32> -> vector<2x128xf32>
    %c0_12 = arith.constant 0 : index
    %c0_13 = arith.constant 0 : index
    %41 = vector.load %arg3[%c0_12, %c0_13] : memref<9x128xf32, #tpu.memory_space<vmem>>, vector<1x128xf32>
    %42 = vector.broadcast %41 : vector<1x128xf32> to vector<2x128xf32>
    %43 = arith.mulf %40, %42 : vector<2x128xf32>
    %44 = vector.extract_strided_slice %43 {offsets = [0, 0], sizes = [1, 128], strides = [1, 1]} : vector<2x128xf32> to vector<1x128xf32>
    %c0_14 = arith.constant 0 : index
    %45 = memref.load %arg6[%c0_14] : memref<36xf32, #tpu.memory_space<smem>>
    %46 = vector.broadcast %45 : f32 to vector<1x128xf32>
    %47 = arith.mulf %46, %44 : vector<1x128xf32>
    %c18 = arith.constant 18 : index
    %48 = memref.load %arg6[%c18] : memref<36xf32, #tpu.memory_space<smem>>
    %49 = vector.broadcast %48 : f32 to vector<1x128xf32>
    %50 = arith.mulf %49, %44 : vector<1x128xf32>
    %51 = vector.extract_strided_slice %43 {offsets = [1, 0], sizes = [1, 128], strides = [1, 1]} : vector<2x128xf32> to vector<1x128xf32>
    %c1 = arith.constant 1 : index
    %52 = memref.load %arg6[%c1] : memref<36xf32, #tpu.memory_space<smem>>
    %53 = vector.broadcast %52 : f32 to vector<1x128xf32>
    %54 = arith.mulf %53, %51 : vector<1x128xf32>
    %55 = arith.addf %47, %54 : vector<1x128xf32>
    %c19 = arith.constant 19 : index
    %56 = memref.load %arg6[%c19] : memref<36xf32, #tpu.memory_space<smem>>
    %57 = vector.broadcast %56 : f32 to vector<1x128xf32>
    %58 = arith.mulf %57, %51 : vector<1x128xf32>
    %59 = arith.addf %50, %58 : vector<1x128xf32>
    %60 = vector.extract_strided_slice %37 {offsets = [0, 120], sizes = [2, 8], strides = [1, 1]} : vector<2x128xf32> to vector<2x8xf32>
    %61 = vector.extract_strided_slice %37 {offsets = [0, 0], sizes = [2, 120], strides = [1, 1]} : vector<2x128xf32> to vector<2x120xf32>
    %62 = tpu.concatenate %60, %61 in 1 : vector<2x8xf32>, vector<2x120xf32> -> vector<2x128xf32>
    %c1_15 = arith.constant 1 : index
    %c0_16 = arith.constant 0 : index
    %63 = vector.load %arg3[%c1_15, %c0_16] : memref<9x128xf32, #tpu.memory_space<vmem>>, vector<1x128xf32>
    %64 = vector.broadcast %63 : vector<1x128xf32> to vector<2x128xf32>
    %65 = arith.mulf %62, %64 : vector<2x128xf32>
    %66 = vector.extract_strided_slice %65 {offsets = [0, 0], sizes = [1, 128], strides = [1, 1]} : vector<2x128xf32> to vector<1x128xf32>
    %c2 = arith.constant 2 : index
    %67 = memref.load %arg6[%c2] : memref<36xf32, #tpu.memory_space<smem>>
    %68 = vector.broadcast %67 : f32 to vector<1x128xf32>
    %69 = arith.mulf %68, %66 : vector<1x128xf32>
    %70 = arith.addf %55, %69 : vector<1x128xf32>
    %c20 = arith.constant 20 : index
    %71 = memref.load %arg6[%c20] : memref<36xf32, #tpu.memory_space<smem>>
    %72 = vector.broadcast %71 : f32 to vector<1x128xf32>
    %73 = arith.mulf %72, %66 : vector<1x128xf32>
    %74 = arith.addf %59, %73 : vector<1x128xf32>
    %75 = vector.extract_strided_slice %65 {offsets = [1, 0], sizes = [1, 128], strides = [1, 1]} : vector<2x128xf32> to vector<1x128xf32>
    %c3 = arith.constant 3 : index
    %76 = memref.load %arg6[%c3] : memref<36xf32, #tpu.memory_space<smem>>
    %77 = vector.broadcast %76 : f32 to vector<1x128xf32>
    %78 = arith.mulf %77, %75 : vector<1x128xf32>
    %79 = arith.addf %70, %78 : vector<1x128xf32>
    %c21 = arith.constant 21 : index
    %80 = memref.load %arg6[%c21] : memref<36xf32, #tpu.memory_space<smem>>
    %81 = vector.broadcast %80 : f32 to vector<1x128xf32>
    %82 = arith.mulf %81, %75 : vector<1x128xf32>
    %83 = arith.addf %74, %82 : vector<1x128xf32>
    %84 = vector.extract_strided_slice %37 {offsets = [0, 121], sizes = [2, 7], strides = [1, 1]} : vector<2x128xf32> to vector<2x7xf32>
    %85 = vector.extract_strided_slice %37 {offsets = [0, 0], sizes = [2, 121], strides = [1, 1]} : vector<2x128xf32> to vector<2x121xf32>
    %86 = tpu.concatenate %84, %85 in 1 : vector<2x7xf32>, vector<2x121xf32> -> vector<2x128xf32>
    %c2_17 = arith.constant 2 : index
    %c0_18 = arith.constant 0 : index
    %87 = vector.load %arg3[%c2_17, %c0_18] : memref<9x128xf32, #tpu.memory_space<vmem>>, vector<1x128xf32>
    %88 = vector.broadcast %87 : vector<1x128xf32> to vector<2x128xf32>
    %89 = arith.mulf %86, %88 : vector<2x128xf32>
    %90 = vector.extract_strided_slice %89 {offsets = [0, 0], sizes = [1, 128], strides = [1, 1]} : vector<2x128xf32> to vector<1x128xf32>
    %c4 = arith.constant 4 : index
    %91 = memref.load %arg6[%c4] : memref<36xf32, #tpu.memory_space<smem>>
    %92 = vector.broadcast %91 : f32 to vector<1x128xf32>
    %93 = arith.mulf %92, %90 : vector<1x128xf32>
    %94 = arith.addf %79, %93 : vector<1x128xf32>
    %c22 = arith.constant 22 : index
    %95 = memref.load %arg6[%c22] : memref<36xf32, #tpu.memory_space<smem>>
    %96 = vector.broadcast %95 : f32 to vector<1x128xf32>
    %97 = arith.mulf %96, %90 : vector<1x128xf32>
    %98 = arith.addf %83, %97 : vector<1x128xf32>
    %99 = vector.extract_strided_slice %89 {offsets = [1, 0], sizes = [1, 128], strides = [1, 1]} : vector<2x128xf32> to vector<1x128xf32>
    %c5 = arith.constant 5 : index
    %100 = memref.load %arg6[%c5] : memref<36xf32, #tpu.memory_space<smem>>
    %101 = vector.broadcast %100 : f32 to vector<1x128xf32>
    %102 = arith.mulf %101, %99 : vector<1x128xf32>
    %103 = arith.addf %94, %102 : vector<1x128xf32>
    %c23 = arith.constant 23 : index
    %104 = memref.load %arg6[%c23] : memref<36xf32, #tpu.memory_space<smem>>
    %105 = vector.broadcast %104 : f32 to vector<1x128xf32>
    %106 = arith.mulf %105, %99 : vector<1x128xf32>
    %107 = arith.addf %98, %106 : vector<1x128xf32>
    %108 = vector.extract_strided_slice %37 {offsets = [0, 127], sizes = [2, 1], strides = [1, 1]} : vector<2x128xf32> to vector<2x1xf32>
    %109 = vector.extract_strided_slice %37 {offsets = [0, 0], sizes = [2, 127], strides = [1, 1]} : vector<2x128xf32> to vector<2x127xf32>
    %110 = tpu.concatenate %108, %109 in 1 : vector<2x1xf32>, vector<2x127xf32> -> vector<2x128xf32>
    %c3_19 = arith.constant 3 : index
    %c0_20 = arith.constant 0 : index
    %111 = vector.load %arg3[%c3_19, %c0_20] : memref<9x128xf32, #tpu.memory_space<vmem>>, vector<1x128xf32>
    %112 = vector.broadcast %111 : vector<1x128xf32> to vector<2x128xf32>
    %113 = arith.mulf %110, %112 : vector<2x128xf32>
    %114 = vector.extract_strided_slice %113 {offsets = [0, 0], sizes = [1, 128], strides = [1, 1]} : vector<2x128xf32> to vector<1x128xf32>
    %c6 = arith.constant 6 : index
    %115 = memref.load %arg6[%c6] : memref<36xf32, #tpu.memory_space<smem>>
    %116 = vector.broadcast %115 : f32 to vector<1x128xf32>
    %117 = arith.mulf %116, %114 : vector<1x128xf32>
    %c24 = arith.constant 24 : index
    %118 = memref.load %arg6[%c24] : memref<36xf32, #tpu.memory_space<smem>>
    %119 = vector.broadcast %118 : f32 to vector<1x128xf32>
    %120 = arith.mulf %119, %114 : vector<1x128xf32>
    %121 = vector.extract_strided_slice %113 {offsets = [1, 0], sizes = [1, 128], strides = [1, 1]} : vector<2x128xf32> to vector<1x128xf32>
    %c7 = arith.constant 7 : index
    %122 = memref.load %arg6[%c7] : memref<36xf32, #tpu.memory_space<smem>>
    %123 = vector.broadcast %122 : f32 to vector<1x128xf32>
    %124 = arith.mulf %123, %121 : vector<1x128xf32>
    %125 = arith.addf %117, %124 : vector<1x128xf32>
    %c25 = arith.constant 25 : index
    %126 = memref.load %arg6[%c25] : memref<36xf32, #tpu.memory_space<smem>>
    %127 = vector.broadcast %126 : f32 to vector<1x128xf32>
    %128 = arith.mulf %127, %121 : vector<1x128xf32>
    %129 = arith.addf %120, %128 : vector<1x128xf32>
    %130 = vector.extract_strided_slice %37 {offsets = [0, 0], sizes = [1, 128], strides = [1, 1]} : vector<2x128xf32> to vector<1x128xf32>
    %c8 = arith.constant 8 : index
    %131 = memref.load %arg6[%c8] : memref<36xf32, #tpu.memory_space<smem>>
    %132 = vector.broadcast %131 : f32 to vector<1x128xf32>
    %133 = arith.mulf %132, %130 : vector<1x128xf32>
    %134 = arith.addf %125, %133 : vector<1x128xf32>
    %c26 = arith.constant 26 : index
    %135 = memref.load %arg6[%c26] : memref<36xf32, #tpu.memory_space<smem>>
    %136 = vector.broadcast %135 : f32 to vector<1x128xf32>
    %137 = arith.mulf %136, %130 : vector<1x128xf32>
    %138 = arith.addf %129, %137 : vector<1x128xf32>
    %139 = vector.extract_strided_slice %37 {offsets = [1, 0], sizes = [1, 128], strides = [1, 1]} : vector<2x128xf32> to vector<1x128xf32>
    %c9 = arith.constant 9 : index
    %140 = memref.load %arg6[%c9] : memref<36xf32, #tpu.memory_space<smem>>
    %141 = vector.broadcast %140 : f32 to vector<1x128xf32>
    %142 = arith.mulf %141, %139 : vector<1x128xf32>
    %143 = arith.addf %134, %142 : vector<1x128xf32>
    %c27 = arith.constant 27 : index
    %144 = memref.load %arg6[%c27] : memref<36xf32, #tpu.memory_space<smem>>
    %145 = vector.broadcast %144 : f32 to vector<1x128xf32>
    %146 = arith.mulf %145, %139 : vector<1x128xf32>
    %147 = arith.addf %138, %146 : vector<1x128xf32>
    %148 = vector.extract_strided_slice %37 {offsets = [0, 1], sizes = [2, 127], strides = [1, 1]} : vector<2x128xf32> to vector<2x127xf32>
    %149 = vector.extract_strided_slice %37 {offsets = [0, 0], sizes = [2, 1], strides = [1, 1]} : vector<2x128xf32> to vector<2x1xf32>
    %150 = tpu.concatenate %148, %149 in 1 : vector<2x127xf32>, vector<2x1xf32> -> vector<2x128xf32>
    %c5_21 = arith.constant 5 : index
    %c0_22 = arith.constant 0 : index
    %151 = vector.load %arg3[%c5_21, %c0_22] : memref<9x128xf32, #tpu.memory_space<vmem>>, vector<1x128xf32>
    %152 = vector.broadcast %151 : vector<1x128xf32> to vector<2x128xf32>
    %153 = arith.mulf %150, %152 : vector<2x128xf32>
    %154 = vector.extract_strided_slice %153 {offsets = [0, 0], sizes = [1, 128], strides = [1, 1]} : vector<2x128xf32> to vector<1x128xf32>
    %c10 = arith.constant 10 : index
    %155 = memref.load %arg6[%c10] : memref<36xf32, #tpu.memory_space<smem>>
    %156 = vector.broadcast %155 : f32 to vector<1x128xf32>
    %157 = arith.mulf %156, %154 : vector<1x128xf32>
    %158 = arith.addf %143, %157 : vector<1x128xf32>
    %c28 = arith.constant 28 : index
    %159 = memref.load %arg6[%c28] : memref<36xf32, #tpu.memory_space<smem>>
    %160 = vector.broadcast %159 : f32 to vector<1x128xf32>
    %161 = arith.mulf %160, %154 : vector<1x128xf32>
    %162 = arith.addf %147, %161 : vector<1x128xf32>
    %163 = vector.extract_strided_slice %153 {offsets = [1, 0], sizes = [1, 128], strides = [1, 1]} : vector<2x128xf32> to vector<1x128xf32>
    %c11 = arith.constant 11 : index
    %164 = memref.load %arg6[%c11] : memref<36xf32, #tpu.memory_space<smem>>
    %165 = vector.broadcast %164 : f32 to vector<1x128xf32>
    %166 = arith.mulf %165, %163 : vector<1x128xf32>
    %167 = arith.addf %158, %166 : vector<1x128xf32>
    %c29 = arith.constant 29 : index
    %168 = memref.load %arg6[%c29] : memref<36xf32, #tpu.memory_space<smem>>
    %169 = vector.broadcast %168 : f32 to vector<1x128xf32>
    %170 = arith.mulf %169, %163 : vector<1x128xf32>
    %171 = arith.addf %162, %170 : vector<1x128xf32>
    %172 = vector.extract_strided_slice %37 {offsets = [0, 7], sizes = [2, 121], strides = [1, 1]} : vector<2x128xf32> to vector<2x121xf32>
    %173 = vector.extract_strided_slice %37 {offsets = [0, 0], sizes = [2, 7], strides = [1, 1]} : vector<2x128xf32> to vector<2x7xf32>
    %174 = tpu.concatenate %172, %173 in 1 : vector<2x121xf32>, vector<2x7xf32> -> vector<2x128xf32>
    %c6_23 = arith.constant 6 : index
    %c0_24 = arith.constant 0 : index
    %175 = vector.load %arg3[%c6_23, %c0_24] : memref<9x128xf32, #tpu.memory_space<vmem>>, vector<1x128xf32>
    %176 = vector.broadcast %175 : vector<1x128xf32> to vector<2x128xf32>
    %177 = arith.mulf %174, %176 : vector<2x128xf32>
    %178 = vector.extract_strided_slice %177 {offsets = [0, 0], sizes = [1, 128], strides = [1, 1]} : vector<2x128xf32> to vector<1x128xf32>
    %c12 = arith.constant 12 : index
    %179 = memref.load %arg6[%c12] : memref<36xf32, #tpu.memory_space<smem>>
    %180 = vector.broadcast %179 : f32 to vector<1x128xf32>
    %181 = arith.mulf %180, %178 : vector<1x128xf32>
    %c30 = arith.constant 30 : index
    %182 = memref.load %arg6[%c30] : memref<36xf32, #tpu.memory_space<smem>>
    %183 = vector.broadcast %182 : f32 to vector<1x128xf32>
    %184 = arith.mulf %183, %178 : vector<1x128xf32>
    %185 = vector.extract_strided_slice %177 {offsets = [1, 0], sizes = [1, 128], strides = [1, 1]} : vector<2x128xf32> to vector<1x128xf32>
    %c13 = arith.constant 13 : index
    %186 = memref.load %arg6[%c13] : memref<36xf32, #tpu.memory_space<smem>>
    %187 = vector.broadcast %186 : f32 to vector<1x128xf32>
    %188 = arith.mulf %187, %185 : vector<1x128xf32>
    %189 = arith.addf %181, %188 : vector<1x128xf32>
    %c31 = arith.constant 31 : index
    %190 = memref.load %arg6[%c31] : memref<36xf32, #tpu.memory_space<smem>>
    %191 = vector.broadcast %190 : f32 to vector<1x128xf32>
    %192 = arith.mulf %191, %185 : vector<1x128xf32>
    %193 = arith.addf %184, %192 : vector<1x128xf32>
    %194 = vector.extract_strided_slice %37 {offsets = [0, 8], sizes = [2, 120], strides = [1, 1]} : vector<2x128xf32> to vector<2x120xf32>
    %195 = vector.extract_strided_slice %37 {offsets = [0, 0], sizes = [2, 8], strides = [1, 1]} : vector<2x128xf32> to vector<2x8xf32>
    %196 = tpu.concatenate %194, %195 in 1 : vector<2x120xf32>, vector<2x8xf32> -> vector<2x128xf32>
    %c7_25 = arith.constant 7 : index
    %c0_26 = arith.constant 0 : index
    %197 = vector.load %arg3[%c7_25, %c0_26] : memref<9x128xf32, #tpu.memory_space<vmem>>, vector<1x128xf32>
    %198 = vector.broadcast %197 : vector<1x128xf32> to vector<2x128xf32>
    %199 = arith.mulf %196, %198 : vector<2x128xf32>
    %200 = vector.extract_strided_slice %199 {offsets = [0, 0], sizes = [1, 128], strides = [1, 1]} : vector<2x128xf32> to vector<1x128xf32>
    %c14 = arith.constant 14 : index
    %201 = memref.load %arg6[%c14] : memref<36xf32, #tpu.memory_space<smem>>
    %202 = vector.broadcast %201 : f32 to vector<1x128xf32>
    %203 = arith.mulf %202, %200 : vector<1x128xf32>
    %204 = arith.addf %189, %203 : vector<1x128xf32>
    %c32 = arith.constant 32 : index
    %205 = memref.load %arg6[%c32] : memref<36xf32, #tpu.memory_space<smem>>
    %206 = vector.broadcast %205 : f32 to vector<1x128xf32>
    %207 = arith.mulf %206, %200 : vector<1x128xf32>
    %208 = arith.addf %193, %207 : vector<1x128xf32>
    %209 = vector.extract_strided_slice %199 {offsets = [1, 0], sizes = [1, 128], strides = [1, 1]} : vector<2x128xf32> to vector<1x128xf32>
    %c15 = arith.constant 15 : index
    %210 = memref.load %arg6[%c15] : memref<36xf32, #tpu.memory_space<smem>>
    %211 = vector.broadcast %210 : f32 to vector<1x128xf32>
    %212 = arith.mulf %211, %209 : vector<1x128xf32>
    %213 = arith.addf %204, %212 : vector<1x128xf32>
    %c33 = arith.constant 33 : index
    %214 = memref.load %arg6[%c33] : memref<36xf32, #tpu.memory_space<smem>>
    %215 = vector.broadcast %214 : f32 to vector<1x128xf32>
    %216 = arith.mulf %215, %209 : vector<1x128xf32>
    %217 = arith.addf %208, %216 : vector<1x128xf32>
    %218 = vector.extract_strided_slice %37 {offsets = [0, 9], sizes = [2, 119], strides = [1, 1]} : vector<2x128xf32> to vector<2x119xf32>
    %219 = vector.extract_strided_slice %37 {offsets = [0, 0], sizes = [2, 9], strides = [1, 1]} : vector<2x128xf32> to vector<2x9xf32>
    %220 = tpu.concatenate %218, %219 in 1 : vector<2x119xf32>, vector<2x9xf32> -> vector<2x128xf32>
    %c8_27 = arith.constant 8 : index
    %c0_28 = arith.constant 0 : index
    %221 = vector.load %arg3[%c8_27, %c0_28] : memref<9x128xf32, #tpu.memory_space<vmem>>, vector<1x128xf32>
    %222 = vector.broadcast %221 : vector<1x128xf32> to vector<2x128xf32>
    %223 = arith.mulf %220, %222 : vector<2x128xf32>
    %224 = vector.extract_strided_slice %223 {offsets = [0, 0], sizes = [1, 128], strides = [1, 1]} : vector<2x128xf32> to vector<1x128xf32>
    %c16 = arith.constant 16 : index
    %225 = memref.load %arg6[%c16] : memref<36xf32, #tpu.memory_space<smem>>
    %226 = vector.broadcast %225 : f32 to vector<1x128xf32>
    %227 = arith.mulf %226, %224 : vector<1x128xf32>
    %228 = arith.addf %213, %227 : vector<1x128xf32>
    %c34 = arith.constant 34 : index
    %229 = memref.load %arg6[%c34] : memref<36xf32, #tpu.memory_space<smem>>
    %230 = vector.broadcast %229 : f32 to vector<1x128xf32>
    %231 = arith.mulf %230, %224 : vector<1x128xf32>
    %232 = arith.addf %217, %231 : vector<1x128xf32>
    %233 = vector.extract_strided_slice %223 {offsets = [1, 0], sizes = [1, 128], strides = [1, 1]} : vector<2x128xf32> to vector<1x128xf32>
    %c17 = arith.constant 17 : index
    %234 = memref.load %arg6[%c17] : memref<36xf32, #tpu.memory_space<smem>>
    %235 = vector.broadcast %234 : f32 to vector<1x128xf32>
    %236 = arith.mulf %235, %233 : vector<1x128xf32>
    %237 = arith.addf %228, %236 : vector<1x128xf32>
    %c35 = arith.constant 35 : index
    %238 = memref.load %arg6[%c35] : memref<36xf32, #tpu.memory_space<smem>>
    %239 = vector.broadcast %238 : f32 to vector<1x128xf32>
    %240 = arith.mulf %239, %233 : vector<1x128xf32>
    %241 = arith.addf %232, %240 : vector<1x128xf32>
    %c0_29 = arith.constant 0 : index
    %242 = memref.load %arg7[%c0_29] : memref<2xf32, #tpu.memory_space<smem>>
    %243 = vector.broadcast %242 : f32 to vector<1x128xf32>
    %244 = arith.addf %243, %103 : vector<1x128xf32>
    %245 = arith.addf %244, %167 : vector<1x128xf32>
    %246 = arith.addf %245, %237 : vector<1x128xf32>
    %cst_30 = arith.constant 0.000000e+00 : f32
    %247 = vector.broadcast %cst_30 : f32 to vector<1x128xf32>
    %248 = arith.maximumf %246, %247 : vector<1x128xf32>
    %c1_31 = arith.constant 1 : index
    %249 = memref.load %arg7[%c1_31] : memref<2xf32, #tpu.memory_space<smem>>
    %250 = vector.broadcast %249 : f32 to vector<1x128xf32>
    %251 = arith.addf %250, %107 : vector<1x128xf32>
    %252 = arith.addf %251, %171 : vector<1x128xf32>
    %253 = arith.addf %252, %241 : vector<1x128xf32>
    %cst_32 = arith.constant 0.000000e+00 : f32
    %254 = vector.broadcast %cst_32 : f32 to vector<1x128xf32>
    %255 = arith.maximumf %253, %254 : vector<1x128xf32>
    %c0_33 = arith.constant 0 : index
    %c0_34 = arith.constant 0 : index
    %256 = vector.load %arg9[%c0_33, %c0_34] : memref<16x1xf32, #tpu.memory_space<vmem>>, vector<16x1xf32>
    %c0_35 = arith.constant 0 : index
    %c0_36 = arith.constant 0 : index
    %257 = vector.load %arg8[%c0_35, %c0_36] : memref<16x2xf32, #tpu.memory_space<vmem>>, vector<16x1xf32>
    %258 = vector.broadcast %257 : vector<16x1xf32> to vector<16x128xf32>
    %259 = vector.broadcast %248 : vector<1x128xf32> to vector<16x128xf32>
    %260 = arith.mulf %258, %259 : vector<16x128xf32>
    %261 = vector.broadcast %256 : vector<16x1xf32> to vector<16x128xf32>
    %262 = arith.addf %261, %260 : vector<16x128xf32>
    %c0_37 = arith.constant 0 : index
    %c1_38 = arith.constant 1 : index
    %263 = vector.load %arg8[%c0_37, %c1_38] : memref<16x2xf32, #tpu.memory_space<vmem>>, vector<16x1xf32>
    %264 = vector.broadcast %263 : vector<16x1xf32> to vector<16x128xf32>
    %265 = vector.broadcast %255 : vector<1x128xf32> to vector<16x128xf32>
    %266 = arith.mulf %264, %265 : vector<16x128xf32>
    %267 = arith.addf %262, %266 : vector<16x128xf32>
    %cst_39 = arith.constant 0.000000e+00 : f32
    %268 = vector.broadcast %cst_39 : f32 to vector<16x128xf32>
    %269 = arith.maximumf %267, %268 : vector<16x128xf32>
    %270 = vector.extract_strided_slice %269 {offsets = [0, 0], sizes = [8, 128], strides = [1, 1]} : vector<16x128xf32> to vector<8x128xf32>
    %271 = arith.addf %8, %270 : vector<8x128xf32>
    %cst_40 = arith.constant 0.000000e+00 : f32
    %272 = vector.broadcast %cst_40 : f32 to vector<8x128xf32>
    %273 = arith.maximumf %271, %272 : vector<8x128xf32>
    %c0_41 = arith.constant 0 : index
    %c0_42 = arith.constant 0 : index
    %c0_43 = arith.constant 0 : index
    %274 = vector.load %arg10[%c0_41, %c0_42, %c0_43] : memref<1x16x128xf32, #tpu.memory_space<vmem>>, vector<1x8x128xf32>
    %275 = vector.shape_cast %274 : vector<1x8x128xf32> to vector<8x128xf32>
    %276 = vector.shape_cast %273 : vector<8x128xf32> to vector<1x8x128xf32>
    tpu.vector_store %arg10[%c0_41, %c0_42, %c0_43], %276 {strides = array<i32>} : memref<1x16x128xf32, #tpu.memory_space<vmem>>, vector<1x8x128xf32>,
    %277 = vector.extract_strided_slice %269 {offsets = [8, 0], sizes = [8, 128], strides = [1, 1]} : vector<16x128xf32> to vector<8x128xf32>
    %c0_44 = arith.constant 0 : index
    %c8_45 = arith.constant 8 : index
    %c0_46 = arith.constant 0 : index
    %278 = vector.load %arg10[%c0_44, %c8_45, %c0_46] : memref<1x16x128xf32, #tpu.memory_space<vmem>>, vector<1x8x128xf32>
    %279 = vector.shape_cast %278 : vector<1x8x128xf32> to vector<8x128xf32>
    %280 = vector.shape_cast %277 : vector<8x128xf32> to vector<1x8x128xf32>
    tpu.vector_store %arg10[%c0_44, %c8_45, %c0_46], %280 {strides = array<i32>} : memref<1x16x128xf32, #tpu.memory_space<vmem>>, vector<1x8x128xf32>,
    return
  }
  func.func @transform_0(%arg0: i32) -> (i32, i32, i32) {
    %c0_i32 = arith.constant 0 : i32
    %c0_i32_0 = arith.constant 0 : i32
    %c0_i32_1 = arith.constant 0 : i32
    return %arg0, %c0_i32, %c0_i32_0 : i32, i32, i32
  }
  func.func @transform_1(%arg0: i32) -> (i32, i32) {
    %c0_i32 = arith.constant 0 : i32
    %c0_i32_0 = arith.constant 0 : i32
    %c0_i32_1 = arith.constant 0 : i32
    return %c0_i32, %c0_i32_0 : i32, i32
  }
  func.func @transform_2(%arg0: i32) -> (i32, i32) {
    %c0_i32 = arith.constant 0 : i32
    %c0_i32_0 = arith.constant 0 : i32
    %c0_i32_1 = arith.constant 0 : i32
    return %c0_i32, %c0_i32_0 : i32, i32
  }
  func.func @transform_3(%arg0: i32) -> (i32, i32) {
    %c0_i32 = arith.constant 0 : i32
    %c0_i32_0 = arith.constant 0 : i32
    %c0_i32_1 = arith.constant 0 : i32
    return %c0_i32, %c0_i32_0 : i32, i32
  }
  func.func @transform_4(%arg0: i32) -> (i32, i32) {
    %c0_i32 = arith.constant 0 : i32
    %c0_i32_0 = arith.constant 0 : i32
    %c0_i32_1 = arith.constant 0 : i32
    return %c0_i32, %c0_i32_0 : i32, i32
  }
  func.func @transform_5(%arg0: i32) -> i32 {
    %c0_i32 = arith.constant 0 : i32
    %c0_i32_0 = arith.constant 0 : i32
    return %c0_i32 : i32
  }
  func.func @transform_6(%arg0: i32) -> i32 {
    %c0_i32 = arith.constant 0 : i32
    %c0_i32_0 = arith.constant 0 : i32
    return %c0_i32 : i32
  }
  func.func @transform_7(%arg0: i32) -> (i32, i32) {
    %c0_i32 = arith.constant 0 : i32
    %c0_i32_0 = arith.constant 0 : i32
    %c0_i32_1 = arith.constant 0 : i32
    return %c0_i32, %c0_i32_0 : i32, i32
  }
  func.func @transform_8(%arg0: i32) -> (i32, i32) {
    %c0_i32 = arith.constant 0 : i32
    %c0_i32_0 = arith.constant 0 : i32
    %c0_i32_1 = arith.constant 0 : i32
    return %c0_i32, %c0_i32_0 : i32, i32
  }
  func.func @transform_9(%arg0: i32) -> (i32, i32, i32) {
    %c0_i32 = arith.constant 0 : i32
    %c0_i32_0 = arith.constant 0 : i32
    %c0_i32_1 = arith.constant 0 : i32
    return %arg0, %c0_i32, %c0_i32_0 : i32, i32, i32
  }
  func.func @transform_10(%arg0: i32) -> (i32, i32, i32) {
    %c0_i32 = arith.constant 0 : i32
    %c0_i32_0 = arith.constant 0 : i32
    %c0_i32_1 = arith.constant 0 : i32
    return %arg0, %c0_i32, %c0_i32_0 : i32, i32, i32
  }
}

</mosaic_0001>

<llo_original>
// kernel: downsampling_bottleneck.1
$region0: #{downsampling_bottleneck.1}
  #allocation0 [shape = 'u32[]', space=smem, size = 0x4, offset = 0x4, fixed_abs, tag = 'smem constant byte address 0x4 - core index']
  #allocation1 [shape = 'u32[72,128]{1,0:T(1,128)}', space=vmem, size = 0x9000, scoped, tag = 'internal scratch']
  %s0 = inlined_call_operand.vmem [shape: f32[1,32,128], index: 0, kind: input, shape index: {}]
  %s1 = inlined_call_operand.vmem [shape: s32[4,128], index: 1, kind: input, shape index: {}]
  %s2 = inlined_call_operand.vmem [shape: f32[9,128], index: 2, kind: input, shape index: {}]
  %s3 = inlined_call_operand.vmem [shape: f32[2,32], index: 3, kind: input, shape index: {}]
  %s4 = inlined_call_operand.vmem [shape: f32[2,1], index: 4, kind: input, shape index: {}]
  %s5 = inlined_call_operand.vmem [shape: f32[36], index: 5, kind: input, shape index: {}]
  %s6 = inlined_call_operand.vmem [shape: f32[2], index: 6, kind: input, shape index: {}]
  %s7 = inlined_call_operand.vmem [shape: f32[16,2], index: 7, kind: input, shape index: {}]
  %s8 = inlined_call_operand.vmem [shape: f32[16,1], index: 8, kind: input, shape index: {}]
  %s9 = inlined_call_operand.vmem [shape: f32[1,16,128], index: 9, kind: output, shape index: {0}]
  %s10 = inlined_call_operand.vmem [shape: s32[1,8,128], index: 10, kind: output, shape index: {1}]
  %11 = xla_tuple %s9, %s10
  %s12 = sld [smem:[#allocation0]]
  $region62: #{downsampling_bottleneck.1} parent=0
    _
  %s14 = ssub.s32 1, %s12
  %s15 = scalar_select 0, %s14, %s12
  $region1: #{downsampling_bottleneck.1} parent=0
    #allocation2 [shape = 'u8[512]{0}', space=smem, size = 0x200, scoped, tag = 'input window, operand 5, single buffered']
    #allocation3 [shape = 's32[1]{0}', space=sflag, size = 0x4, scoped, tag = 'scoped memory for downsampling_bottleneck.1']
    #allocation4 [shape = 'u8[512]{0}', space=smem, size = 0x200, scoped, tag = 'input window, operand 6, single buffered']
    #allocation5 [shape = 's32[1]{0}', space=sflag, size = 0x4, scoped, tag = 'scoped memory for downsampling_bottleneck.1']
    %16 = vsyncpa [#allocation3], 0
    %17 = vsyncpa [#allocation5], 0
    // Predicated region
    $region2: #{downsampling_bottleneck.1} parent=1 // pred_check
      _
    $region3: #{downsampling_bottleneck.1} parent=1 // pred_check_branch
      %19 = sbr.rel (0) target = $region5
    $region4: #{downsampling_bottleneck.1} parent=1 // pred_region
      _
    $region5: #{downsampling_bottleneck.1} parent=1 // pred_fallthru
      _
    // Predicated region
    $region6: #{downsampling_bottleneck.1} parent=1 // pred_check
      _
    $region7: #{downsampling_bottleneck.1} parent=1 // pred_check_branch
      %21 = sbr.rel (0) target = $region9
    $region8: #{downsampling_bottleneck.1} parent=1 // pred_region
      _
    $region9: #{downsampling_bottleneck.1} parent=1 // pred_fallthru
      _
    // Predicated region
    $region10: #{downsampling_bottleneck.1} parent=1 // pred_check
      _
    $region11: #{downsampling_bottleneck.1} parent=1 // pred_check_branch
      %23 = sbr.rel (0) target = $region13
    $region12: #{downsampling_bottleneck.1} parent=1 // pred_region
      _
    $region13: #{downsampling_bottleneck.1} parent=1 // pred_fallthru
      _
    // Predicated region
    $region14: #{downsampling_bottleneck.1} parent=1 // pred_check
      _
    $region15: #{downsampling_bottleneck.1} parent=1 // pred_check_branch
      %25 = sbr.rel (0) target = $region17
    $region16: #{downsampling_bottleneck.1} parent=1 // pred_region
      _
    $region17: #{downsampling_bottleneck.1} parent=1 // pred_fallthru
      _
    // Predicated region
    $region18: #{downsampling_bottleneck.1} parent=1 // pred_check
      _
    $region19: #{downsampling_bottleneck.1} parent=1 // pred_check_branch
      %27 = sbr.rel (0) target = $region21
    $region20: #{downsampling_bottleneck.1} parent=1 // pred_region
      _
    $region21: #{downsampling_bottleneck.1} parent=1 // pred_fallthru
      _
    // Predicated region
    $region22: #{downsampling_bottleneck.1} parent=1 // pred_check
      _
    $region23: #{downsampling_bottleneck.1} parent=1 // pred_check_branch
      %29 = sbr.rel (0) target = $region25
    $region24: #{downsampling_bottleneck.1} parent=1 // pred_region
      %31 = vsyncadd [#allocation3], 0
      %s33 = sshll.u32 %s5, 4
      %s34 = int_to_ptr.vmem [resolvable:$true] %s33
      %36 = dma.vmem_to_smem %s34, 16, [#allocation2], [#allocation3]
    $region25: #{downsampling_bottleneck.1} parent=1 // pred_fallthru
      _
    // Predicated region
    $region26: #{downsampling_bottleneck.1} parent=1 // pred_check
      _
    $region27: #{downsampling_bottleneck.1} parent=1 // pred_check_branch
      %38 = sbr.rel (0) target = $region29
    $region28: #{downsampling_bottleneck.1} parent=1 // pred_region
      %40 = vsyncadd [#allocation5], 0
      %s42 = sshll.u32 %s6, 4
      %s43 = int_to_ptr.vmem [resolvable:$true] %s42
      %45 = dma.vmem_to_smem %s43, 16, [#allocation4], [#allocation5]
    $region29: #{downsampling_bottleneck.1} parent=1 // pred_fallthru
      _
    // Predicated region
    $region30: #{downsampling_bottleneck.1} parent=1 // pred_check
      _
    $region31: #{downsampling_bottleneck.1} parent=1 // pred_check_branch
      %47 = sbr.rel (0) target = $region33
    $region32: #{downsampling_bottleneck.1} parent=1 // pred_region
      _
    $region33: #{downsampling_bottleneck.1} parent=1 // pred_fallthru
      _
    // Predicated region
    $region34: #{downsampling_bottleneck.1} parent=1 // pred_check
      _
    $region35: #{downsampling_bottleneck.1} parent=1 // pred_check_branch
      %49 = sbr.rel (0) target = $region37
    $region36: #{downsampling_bottleneck.1} parent=1 // pred_region
      _
    $region37: #{downsampling_bottleneck.1} parent=1 // pred_fallthru
      _
    // Predicated region
    $region38: #{downsampling_bottleneck.1} parent=1 // pred_check
      _
    $region39: #{downsampling_bottleneck.1} parent=1 // pred_check_branch
      %51 = sbr.rel (0) target = $region41
    $region40: #{downsampling_bottleneck.1} parent=1 // pred_region
      %53 = dma.done [#allocation3], 16
    $region41: #{downsampling_bottleneck.1} parent=1 // pred_fallthru
      _
    // Predicated region
    $region42: #{downsampling_bottleneck.1} parent=1 // pred_check
      _
    $region43: #{downsampling_bottleneck.1} parent=1 // pred_check_branch
      %55 = sbr.rel (0) target = $region45
    $region44: #{downsampling_bottleneck.1} parent=1 // pred_region
      %57 = dma.done [#allocation5], 16
    $region45: #{downsampling_bottleneck.1} parent=1 // pred_fallthru
      _
    %58 = sfence
    %v59 = vld [vmem:[%s0] sm:$0xff]
    %v60 = vld [vmem:[%s0 + $0x8] sm:$0xff]
    %v61 = vld [vmem:[%s0 + $0x10] sm:$0xff]
    %v62 = vld [vmem:[%s0 + $0x18] sm:$0xff]
    %v63 = vmax.f32 %v59, %v60
    %v64 = vmax.f32 %v61, %v62
    %v65 = vmax.f32 %v63, %v64
    %v66 = vld [vmem:[%s1] sm:$0xf]
    %vm67 = vcmp.eq.f32.partialorder %v59, %v65
    %vm68 = vcmp.eq.f32.partialorder %v60, %v65
    %vm69 = vcmp.eq.f32.partialorder %v61, %v65
    %v70 = vperm.slane %v66, 2
    %v71 = vperm.slane %v66, 3
    %v72 = vsel %vm69, %v70, %v71
    %v73 = vperm.slane %v66, 1
    %v74 = vsel %vm68, %v73, %v72
    %v75 = vperm.slane %v66, 0
    %v76 = vsel %vm67, %v75, %v74
    %77 = vst [vmem:[%s10] sm:$0xff] %v76
    %v78 = vld [vmem:[%s3] sm:$0x3]
    %v79 = vld [vmem:[%s4] sm:$0x3]
    %81 = vset.pattern.permute.xlu0 0
    %82 = vperm.xlu0 %81, %v79
    %v83 = vpop.permute.xlu0 %82
    %vm85 = vcmask 261120
    %v87 = vsel %vm85, %v78, 0
    %89 = vmatpush.msra.mxu0 0.0
    %90 = vmatpush.msra.mxu0 0.0
    %91 = vmatpush.msra.mxu0 0.0
    %92 = vmatpush.msra.mxu0 0.0
    %93 = vmatpush.msra.mxu0 0.0
    %94 = vmatpush.msra.mxu0 0.0
    %95 = vmatpush.msra.mxu0 0.0
    %96 = vmatpush.msra.mxu0 0.0
    %97 = vmatpush.msra.mxu0 0.0
    %98 = vmatpush.msra.mxu0 0.0
    %99 = vmatpush.msra.mxu0 0.0
    %100 = vmatpush.msra.mxu0 0.0
    %101 = vmatpush.msra.mxu0 %v62
    %102 = vmatpush.msra.mxu0 %v61
    %103 = vmatpush.msra.mxu0 %v60
    %104 = vmatpush.msra.mxu0 %v59
    %105 = vmatmul.f32.gmra.mxu0 %v87
    %v106 = vpop.f32.mrf.mxu0
    %v107 = vadd.f32 %v83, %v106
    %108 = vdwg.mxu0
    %v109 = vmax.f32 %v107, 0.0
    %111 = vrot.lane.b32.xlu0 %v109, 9
    %v112 = vpop.permute.xlu0 %111
    %v114 = vld [vmem:[%s2] sm:$0x1]
    %v115 = vperm.slane %v114, 0
    %v116 = vmul.f32 %v112, %v115
    %s117 = sld [smem:[#allocation2]]
    %v118 = vstv %s117
    %v119 = vmul.f32 %v118, %v116
    %s120 = sld [smem:[#allocation2 + $0x12]]
    %v121 = vstv %s120
    %v122 = vmul.f32 %v121, %v116
    %s123 = sld [smem:[#allocation2 + $0x1]]
    %v124 = vstv %s123
    %v125 = vmul.f32 %v124, %v116
    %v127 = vrot.slane %v125, 1
    %v129 = vadd.f32 %v119, %v127
    %s130 = sld [smem:[#allocation2 + $0x13]]
    %v131 = vstv %s130
    %v132 = vmul.f32 %v131, %v116
    %v134 = vrot.slane %v132, 1
    %v136 = vadd.f32 %v122, %v134
    %137 = vrot.lane.b32.xlu0 %v109, 8
    %v138 = vpop.permute.xlu0 %137
    %v140 = vld [vmem:[%s2 + $0x1] sm:$0x1]
    %v141 = vperm.slane %v140, 0
    %v142 = vmul.f32 %v138, %v141
    %s143 = sld [smem:[#allocation2 + $0x2]]
    %v144 = vstv %s143
    %v145 = vmul.f32 %v144, %v142
    %v146 = vadd.f32 %v129, %v145
    %s147 = sld [smem:[#allocation2 + $0x14]]
    %v148 = vstv %s147
    %v149 = vmul.f32 %v148, %v142
    %v150 = vadd.f32 %v136, %v149
    %s151 = sld [smem:[#allocation2 + $0x3]]
    %v152 = vstv %s151
    %v153 = vmul.f32 %v152, %v142
    %v155 = vrot.slane %v153, 1
    %v157 = vadd.f32 %v146, %v155
    %s158 = sld [smem:[#allocation2 + $0x15]]
    %v159 = vstv %s158
    %v160 = vmul.f32 %v159, %v142
    %v162 = vrot.slane %v160, 1
    %v164 = vadd.f32 %v150, %v162
    %165 = vrot.lane.b32.xlu0 %v109, 7
    %v166 = vpop.permute.xlu0 %165
    %v168 = vld [vmem:[%s2 + $0x2] sm:$0x1]
    %v169 = vperm.slane %v168, 0
    %v170 = vmul.f32 %v166, %v169
    %s171 = sld [smem:[#allocation2 + $0x4]]
    %v172 = vstv %s171
    %v173 = vmul.f32 %v172, %v170
    %v174 = vadd.f32 %v157, %v173
    %s175 = sld [smem:[#allocation2 + $0x16]]
    %v176 = vstv %s175
    %v177 = vmul.f32 %v176, %v170
    %v178 = vadd.f32 %v164, %v177
    %s179 = sld [smem:[#allocation2 + $0x5]]
    %v180 = vstv %s179
    %v181 = vmul.f32 %v180, %v170
    %v183 = vrot.slane %v181, 1
    %v185 = vadd.f32 %v174, %v183
    %s186 = sld [smem:[#allocation2 + $0x17]]
    %v187 = vstv %s186
    %v188 = vmul.f32 %v187, %v170
    %v190 = vrot.slane %v188, 1
    %v192 = vadd.f32 %v178, %v190
    %193 = vrot.lane.b32.xlu0 %v109, 1
    %v194 = vpop.permute.xlu0 %193
    %v196 = vld [vmem:[%s2 + $0x3] sm:$0x1]
    %v197 = vperm.slane %v196, 0
    %v198 = vmul.f32 %v194, %v197
    %s199 = sld [smem:[#allocation2 + $0x6]]
    %v200 = vstv %s199
    %v201 = vmul.f32 %v200, %v198
    %s202 = sld [smem:[#allocation2 + $0x18]]
    %v203 = vstv %s202
    %v204 = vmul.f32 %v203, %v198
    %s205 = sld [smem:[#allocation2 + $0x7]]
    %v206 = vstv %s205
    %v207 = vmul.f32 %v206, %v198
    %v209 = vrot.slane %v207, 1
    %v211 = vadd.f32 %v201, %v209
    %s212 = sld [smem:[#allocation2 + $0x19]]
    %v213 = vstv %s212
    %v214 = vmul.f32 %v213, %v198
    %v216 = vrot.slane %v214, 1
    %v218 = vadd.f32 %v204, %v216
    %s219 = sld [smem:[#allocation2 + $0x8]]
    %v220 = vstv %s219
    %v221 = vmul.f32 %v220, %v109
    %v222 = vadd.f32 %v211, %v221
    %s223 = sld [smem:[#allocation2 + $0x1a]]
    %v224 = vstv %s223
    %v225 = vmul.f32 %v224, %v109
    %v226 = vadd.f32 %v218, %v225
    %s227 = sld [smem:[#allocation2 + $0x9]]
    %v228 = vstv %s227
    %v229 = vmul.f32 %v228, %v109
    %v231 = vrot.slane %v229, 1
    %v233 = vadd.f32 %v222, %v231
    %s234 = sld [smem:[#allocation2 + $0x1b]]
    %v235 = vstv %s234
    %v236 = vmul.f32 %v235, %v109
    %v238 = vrot.slane %v236, 1
    %v240 = vadd.f32 %v226, %v238
    %241 = vrot.lane.b32.xlu0 %v109, 127
    %v242 = vpop.permute.xlu0 %241
    %v244 = vld [vmem:[%s2 + $0x5] sm:$0x1]
    %v245 = vperm.slane %v244, 0
    %v246 = vmul.f32 %v242, %v245
    %s247 = sld [smem:[#allocation2 + $0xa]]
    %v248 = vstv %s247
    %v249 = vmul.f32 %v248, %v246
    %v250 = vadd.f32 %v233, %v249
    %s251 = sld [smem:[#allocation2 + $0x1c]]
    %v252 = vstv %s251
    %v253 = vmul.f32 %v252, %v246
    %v254 = vadd.f32 %v240, %v253
    %s255 = sld [smem:[#allocation2 + $0xb]]
    %v256 = vstv %s255
    %v257 = vmul.f32 %v256, %v246
    %v259 = vrot.slane %v257, 1
    %v261 = vadd.f32 %v250, %v259
    %s262 = sld [smem:[#allocation2 + $0x1d]]
    %v263 = vstv %s262
    %v264 = vmul.f32 %v263, %v246
    %v266 = vrot.slane %v264, 1
    %v268 = vadd.f32 %v254, %v266
    %269 = vrot.lane.b32.xlu0 %v109, 121
    %v270 = vpop.permute.xlu0 %269
    %v272 = vld [vmem:[%s2 + $0x6] sm:$0x1]
    %v273 = vperm.slane %v272, 0
    %v274 = vmul.f32 %v270, %v273
    %s275 = sld [smem:[#allocation2 + $0xc]]
    %v276 = vstv %s275
    %v277 = vmul.f32 %v276, %v274
    %s278 = sld [smem:[#allocation2 + $0x1e]]
    %v279 = vstv %s278
    %v280 = vmul.f32 %v279, %v274
    %s281 = sld [smem:[#allocation2 + $0xd]]
    %v282 = vstv %s281
    %v283 = vmul.f32 %v282, %v274
    %v285 = vrot.slane %v283, 1
    %v287 = vadd.f32 %v277, %v285
    %s288 = sld [smem:[#allocation2 + $0x1f]]
    %v289 = vstv %s288
    %v290 = vmul.f32 %v289, %v274
    %v292 = vrot.slane %v290, 1
    %v294 = vadd.f32 %v280, %v292
    %295 = vrot.lane.b32.xlu0 %v109, 120
    %v296 = vpop.permute.xlu0 %295
    %v298 = vld [vmem:[%s2 + $0x7] sm:$0x1]
    %v299 = vperm.slane %v298, 0
    %v300 = vmul.f32 %v296, %v299
    %s301 = sld [smem:[#allocation2 + $0xe]]
    %v302 = vstv %s301
    %v303 = vmul.f32 %v302, %v300
    %v304 = vadd.f32 %v287, %v303
    %s305 = sld [smem:[#allocation2 + $0x20]]
    %v306 = vstv %s305
    %v307 = vmul.f32 %v306, %v300
    %v308 = vadd.f32 %v294, %v307
    %s309 = sld [smem:[#allocation2 + $0xf]]
    %v310 = vstv %s309
    %v311 = vmul.f32 %v310, %v300
    %v313 = vrot.slane %v311, 1
    %v315 = vadd.f32 %v304, %v313
    %s316 = sld [smem:[#allocation2 + $0x21]]
    %v317 = vstv %s316
    %v318 = vmul.f32 %v317, %v300
    %v320 = vrot.slane %v318, 1
    %v322 = vadd.f32 %v308, %v320
    %323 = vrot.lane.b32.xlu0 %v109, 119
    %v324 = vpop.permute.xlu0 %323
    %v326 = vld [vmem:[%s2 + $0x8] sm:$0x1]
    %v327 = vperm.slane %v326, 0
    %v328 = vmul.f32 %v324, %v327
    %s329 = sld [smem:[#allocation2 + $0x10]]
    %v330 = vstv %s329
    %v331 = vmul.f32 %v330, %v328
    %v332 = vadd.f32 %v315, %v331
    %s333 = sld [smem:[#allocation2 + $0x22]]
    %v334 = vstv %s333
    %v335 = vmul.f32 %v334, %v328
    %v336 = vadd.f32 %v322, %v335
    %s337 = sld [smem:[#allocation2 + $0x11]]
    %v338 = vstv %s337
    %v339 = vmul.f32 %v338, %v328
    %v341 = vrot.slane %v339, 1
    %v343 = vadd.f32 %v332, %v341
    %s344 = sld [smem:[#allocation2 + $0x23]]
    %v345 = vstv %s344
    %v346 = vmul.f32 %v345, %v328
    %v348 = vrot.slane %v346, 1
    %v350 = vadd.f32 %v336, %v348
    %s351 = sld [smem:[#allocation4]]
    %v352 = vstv %s351
    %v353 = vadd.f32 %v352, %v185
    %v354 = vadd.f32 %v353, %v261
    %v355 = vadd.f32 %v354, %v343
    %v356 = vmax.f32 %v355, 0.0
    %s357 = sld [smem:[#allocation4 + $0x1]]
    %v358 = vstv %s357
    %v359 = vadd.f32 %v358, %v192
    %v360 = vadd.f32 %v359, %v268
    %v361 = vadd.f32 %v360, %v350
    %v362 = vmax.f32 %v361, 0.0
    %v363 = vld [vmem:[%s8] sm:$0xff]
    %v364 = vld [vmem:[%s8 + $0x8] sm:$0xff]
    %v365 = vld [vmem:[%s7] sm:$0xff]
    %v366 = vld [vmem:[%s7 + $0x8] sm:$0xff]
    %368 = vset.pattern.permute.xlu0 0
    %369 = vperm.xlu0 %368, %v365
    %v370 = vpop.permute.xlu0 %369
    %373 = vset.pattern.permute.xlu0 0
    %374 = vperm.xlu0 %373, %v366
    %v375 = vpop.permute.xlu0 %374
    %v377 = vperm.slane %v356, 0
    %v378 = vmul.f32 %v370, %v377
    %v379 = vmul.f32 %v375, %v377
    %381 = vset.pattern.permute.xlu0 0
    %382 = vperm.xlu0 %381, %v363
    %v383 = vpop.permute.xlu0 %382
    %386 = vset.pattern.permute.xlu0 0
    %387 = vperm.xlu0 %386, %v364
    %v388 = vpop.permute.xlu0 %387
    %v390 = vadd.f32 %v383, %v378
    %v391 = vadd.f32 %v388, %v379
    %392 = vset.pattern.permute.xlu0 1
    %393 = vperm.xlu0 %392, %v365
    %v394 = vpop.permute.xlu0 %393
    %396 = vset.pattern.permute.xlu0 1
    %397 = vperm.xlu0 %396, %v366
    %v398 = vpop.permute.xlu0 %397
    %v400 = vperm.slane %v362, 0
    %v401 = vmul.f32 %v394, %v400
    %v402 = vmul.f32 %v398, %v400
    %v403 = vadd.f32 %v390, %v401
    %v404 = vadd.f32 %v391, %v402
    %v405 = vmax.f32 %v403, 0.0
    %v406 = vmax.f32 %v404, 0.0
    %v407 = vadd.f32 %v65, %v405
    %v408 = vmax.f32 %v407, 0.0
    %409 = vst [vmem:[%s9] sm:$0xff] %v408
    %410 = vst [vmem:[%s9 + $0x8] sm:$0xff] %v406
    // Predicated region
    $region46: #{downsampling_bottleneck.1} parent=1 // pred_check
      _
    $region47: #{downsampling_bottleneck.1} parent=1 // pred_check_branch
      %412 = sbr.rel (0) target = $region49
    $region48: #{downsampling_bottleneck.1} parent=1 // pred_region
      _
    $region49: #{downsampling_bottleneck.1} parent=1 // pred_fallthru
      _
    // Predicated region
    $region50: #{downsampling_bottleneck.1} parent=1 // pred_check
      _
    $region51: #{downsampling_bottleneck.1} parent=1 // pred_check_branch
      %414 = sbr.rel (0) target = $region53
    $region52: #{downsampling_bottleneck.1} parent=1 // pred_region
      _
    $region53: #{downsampling_bottleneck.1} parent=1 // pred_fallthru
      _
    // Predicated region
    $region54: #{downsampling_bottleneck.1} parent=1 // pred_check
      _
    $region55: #{downsampling_bottleneck.1} parent=1 // pred_check_branch
      %416 = sbr.rel (0) target = $region57
    $region56: #{downsampling_bottleneck.1} parent=1 // pred_region
      _
    $region57: #{downsampling_bottleneck.1} parent=1 // pred_fallthru
      _
    // Predicated region
    $region58: #{downsampling_bottleneck.1} parent=1 // pred_check
      _
    $region59: #{downsampling_bottleneck.1} parent=1 // pred_check_branch
      %418 = sbr.rel (0) target = $region61
    $region60: #{downsampling_bottleneck.1} parent=1 // pred_region
      _
    $region61: #{downsampling_bottleneck.1} parent=1 // pred_fallthru
      _
    %419 = vsyncpa [#allocation3], 1
    %420 = vsyncpa [#allocation5], 1

</llo_original>
